<compile_context>
chip_gen: v5e
topology: v5e:2x2
jax: 0.10.0
libtpu: 0.0.40
codegen_flags: <defaults>
</compile_context>

<pallas_src>
import functools

import jax
import jax.numpy as jnp
from jax.experimental import pallas as pl
from jax.experimental.pallas import tpu as pltpu


def _policy_head_kernel(x_ref, w_ref, b_ref, out_ref, *, activation, precision):
    # One batch tile: [TB, D] @ [D, A] -> [TB, A], bias add, activation.
    z = jnp.dot(x_ref[...], w_ref[...],
                preferred_element_type=jnp.float32, precision=precision)
    z = z + b_ref[...]
    out_ref[...] = activation(z).astype(out_ref.dtype)


def _round_up(x, m):
    return pl.cdiv(x, m) * m


def prepare_policy_head_params(weight, bias):
    """One-time (init-time) parameter prep for the policy head.

    Pads the action dim up to a multiple of 128 only when A > 128 and not
    already a multiple (lane-dense unmasked stores for large heads). Small
    heads (A <= 128) are left untouched: full-last-dim blocks are legal and a
    masked store on a narrow last dim is far cheaper than 16x-inflated store
    traffic plus an output re-slice.

    Returns (weight_p [D, A_p], bias_p [1, A_p], action_size).
    """
    D, A = weight.shape
    bias_p = jnp.asarray(bias).reshape(1, A)
    weight_p = weight
    if A > 128 and A % 128 != 0:
        A_pad = _round_up(A, 128)
        weight_p = jnp.pad(weight, ((0, 0), (0, A_pad - A)))
        bias_p = jnp.pad(bias_p, ((0, 0), (0, A_pad - A)))
    return weight_p, bias_p, A


def _pick_batch_tile(B, D, A_p, block_b, vmem_budget_bytes=24 * 1024 * 1024):
    """Batch tile: multiple of 8 sublanes, >=2 grid steps when B > 8, VMEM-safe."""
    if B <= 8:
        return B  # single full-array block, no masking needed
    # >= 2 grid steps so v7x's two TensorCores both get work; on v6e/v5e this
    # just amortizes pipeline overhead. block_b may be raised to 1024-2048 on
    # v5e/v6e (128 MiB VMEM); keep 512 as the v7x-safe default.
    tb = max(8, min(block_b, _round_up(pl.cdiv(B, 2), 8)))

    # Double-buffered x and out tiles + resident weight/bias (Pallas allocates
    # two buffers even for grid-invariant blocks) must fit the default scoped
    # VMEM; shrink the batch tile until they do.
    def vmem_bytes(t):
        return 4 * (2 * t * D + 2 * D * A_p + 2 * A_p + 2 * t * A_p)

    while tb > 8 and vmem_bytes(tb) > vmem_budget_bytes:
        tb = max(8, _round_up(tb // 2, 8))
    # TODO(synk): for very large D (weight alone over budget) add a K-grid
    # with an f32 accumulator (P3) instead of a single full-D block.
    return tb


def deterministic_policy_head(inputs, weight, bias, action_size=None, *,
                              activation=jnp.tanh, block_b=512, precision=None):
    """Forward pass of DeterministicPolicyHead: activation(inputs @ W + b).

    inputs: [B, D] float32
    weight: [D, A_p] float32 (PyTorch Linear weight, stored transposed;
            optionally pre-padded once via prepare_policy_head_params)
    bias:   [A_p] or [1, A_p] float32
    action_size: true A if weight/bias were pre-padded (default: weight cols)
    Returns: [B, action_size] float32
    """
    B, D = inputs.shape
    D2, A_p = weight.shape
    assert D == D2, (D, D2)
    A = A_p if action_size is None else action_size
    bias = bias.reshape(1, A_p)

    TB = _pick_batch_tile(B, D, A_p, block_b)
    grid = (pl.cdiv(B, TB),)

    kernel = functools.partial(_policy_head_kernel, activation=activation,
                               precision=precision)

    out = pl.pallas_call(
        kernel,
        out_shape=jax.ShapeDtypeStruct((B, A_p), jnp.float32),
        grid=grid,
        in_specs=[
            pl.BlockSpec((TB, D), lambda i: (i, 0)),      # batch tile of x
            pl.BlockSpec((D, A_p), lambda i: (0, 0)),     # full weight (resident)
            pl.BlockSpec((1, A_p), lambda i: (0, 0)),     # full bias (resident)
        ],
        out_specs=pl.BlockSpec((TB, A_p), lambda i: (i, 0)),
        compiler_params=pltpu.CompilerParams(
            # Batch tiles are independent -> shard across the 2 TCs on v7x
            # (free annotation on v5e/v6e).
            dimension_semantics=("parallel",),
        ),
    )(inputs, weight, bias)

    if A != A_p:
        out = out[:, :A]
    return out


if __name__ == "__main__":
    # Small shapes consistent with the module's forward.
    B, D, A = 2, 32, 8

    key = jax.random.PRNGKey(0)
    kx, kw, kb = jax.random.split(key, 3)

    inputs = jax.random.normal(kx, (B, D), dtype=jnp.float32)

    # Deterministic Linear init (PyTorch-style uniform +-1/sqrt(fan_in)),
    # stored transposed: [input_size, action_size].
    # TODO(synk): the optional `fn` init hook (action_layer.apply(fn)) is an
    # initialization-time concern with no forward-pass Pallas equivalent.
    bound = 1.0 / jnp.sqrt(jnp.float32(D))
    weight = jax.random.uniform(kw, (D, A), minval=-bound, maxval=bound,
                                dtype=jnp.float32)
    bias = jax.random.uniform(kb, (A,), minval=-bound, maxval=bound,
                              dtype=jnp.float32)

    # Init-time parameter prep (a no-op pad for A=8 < 128).
    w_p, b_p, a_size = prepare_policy_head_params(weight, bias)

    out = deterministic_policy_head(inputs, w_p, b_p, a_size)
    jax.block_until_ready(out)

    # Pure-JAX reference check.
    ref = jnp.tanh(inputs @ weight + bias[None, :])
    assert out.shape == (B, A), out.shape
    assert jnp.allclose(out, ref, atol=1e-5), "output mismatch"

    print("KERNEL_OK")
</pallas_src>

<mosaic_0001>
module attributes {stable_mosaic.version = 11 : i64} {
  func.func @_policy_head_kernel(%arg0: i32, %arg1: memref<2x32xf32, #tpu.memory_space<vmem>>, %arg2: memref<32x8xf32, #tpu.memory_space<vmem>>, %arg3: memref<1x8xf32, #tpu.memory_space<vmem>>, %arg4: memref<2x8xf32, #tpu.memory_space<vmem>>) attributes {dimension_semantics = [#tpu.dimension_semantics<parallel>], iteration_bounds = array<i64: 1>, scalar_prefetch = 0 : i64, scratch_operands = 0 : i64, tpu.core_type = #tpu.core_type<tc>, window_params = [{transform_indices = @transform_0, window_bounds = array<i64: 2, 32>}, {pipeline_mode = #tpu.pipeline_mode<synchronous>, transform_indices = @transform_1, window_bounds = array<i64: 32, 8>}, {pipeline_mode = #tpu.pipeline_mode<synchronous>, transform_indices = @transform_2, window_bounds = array<i64: 1, 8>}, {transform_indices = @transform_3, window_bounds = array<i64: 2, 8>}]} {
    %c0 = arith.constant 0 : index
    %c0_0 = arith.constant 0 : index
    %0 = vector.load %arg1[%c0, %c0_0] : memref<2x32xf32, #tpu.memory_space<vmem>>, vector<2x32xf32>
    %c0_1 = arith.constant 0 : index
    %c0_2 = arith.constant 0 : index
    %1 = vector.load %arg2[%c0_1, %c0_2] : memref<32x8xf32, #tpu.memory_space<vmem>>, vector<32x8xf32>
    %cst = arith.constant dense<0.000000e+00> : vector<2x8xf32>
    %2 = tpu.matmul %0, %1, %cst {dimension_numbers = #tpu.dot_dimension_numbers<[1], [0], [0], [1], [0, 0, 1, 1], [], []>} : vector<2x32xf32>, vector<32x8xf32>, vector<2x8xf32> -> vector<2x8xf32>
    %c0_3 = arith.constant 0 : index
    %c0_4 = arith.constant 0 : index
    %3 = vector.load %arg3[%c0_3, %c0_4] : memref<1x8xf32, #tpu.memory_space<vmem>>, vector<1x8xf32>
    %4 = vector.broadcast %3 : vector<1x8xf32> to vector<2x8xf32>
    %5 = arith.addf %2, %4 : vector<2x8xf32>
    %6 = math.tanh %5 : vector<2x8xf32>
    %c0_5 = arith.constant 0 : index
    %c0_6 = arith.constant 0 : index
    %7 = vector.load %arg4[%c0_5, %c0_6] : memref<2x8xf32, #tpu.memory_space<vmem>>, vector<2x8xf32>
    tpu.vector_store %arg4[%c0_5, %c0_6], %6 {strides = array<i32>} : memref<2x8xf32, #tpu.memory_space<vmem>>, vector<2x8xf32>,
    return
  }
  func.func @transform_0(%arg0: i32) -> (i32, i32) {
    %c0_i32 = arith.constant 0 : i32
    %c0_i32_0 = arith.constant 0 : i32
    return %arg0, %c0_i32 : i32, i32
  }
  func.func @transform_1(%arg0: i32) -> (i32, i32) {
    %c0_i32 = arith.constant 0 : i32
    %c0_i32_0 = arith.constant 0 : i32
    %c0_i32_1 = arith.constant 0 : i32
    return %c0_i32, %c0_i32_0 : i32, i32
  }
  func.func @transform_2(%arg0: i32) -> (i32, i32) {
    %c0_i32 = arith.constant 0 : i32
    %c0_i32_0 = arith.constant 0 : i32
    %c0_i32_1 = arith.constant 0 : i32
    return %c0_i32, %c0_i32_0 : i32, i32
  }
  func.func @transform_3(%arg0: i32) -> (i32, i32) {
    %c0_i32 = arith.constant 0 : i32
    %c0_i32_0 = arith.constant 0 : i32
    return %arg0, %c0_i32 : i32, i32
  }
}

</mosaic_0001>

<llo_original>
// kernel: tpu_custom_call.1
$region0: #{tpu_custom_call.1}
  #allocation0 [shape = 'u32[]', space=smem, size = 0x4, offset = 0x4, fixed_abs, tag = 'smem constant byte address 0x4 - core index']
  #allocation1 [shape = 'u32[72,128]{1,0:T(1,128)}', space=vmem, size = 0x9000, scoped, tag = 'internal scratch']
  %s0 = inlined_call_operand.vmem [shape: f32[2,32], index: 0, kind: input, shape index: {}]
  %s1 = inlined_call_operand.vmem [shape: f32[32,8], index: 1, kind: input, shape index: {}]
  %s2 = inlined_call_operand.vmem [shape: f32[1,8], index: 2, kind: input, shape index: {}]
  %s3 = inlined_call_operand.hbm [shape: f32[2,8], index: 3, kind: output, shape index: {}]
  %s4 = sld [smem:[#allocation0]]
  $region22: #{tpu_custom_call.1} parent=0
    _
  %s6 = ssub.s32 1, %s4
  %s7 = scalar_select 0, %s6, %s4
  $region1: #{tpu_custom_call.1} parent=0
    #allocation2 [shape = 'u8[1024]{0}', space=vmem, size = 0x400, scoped, tag = 'output window, operand 0, single buffered']
    #allocation3 [shape = 's32[1]{0}', space=sflag, size = 0x4, scoped, tag = 'scoped memory for tpu_custom_call.1']
    %8 = vsyncpa [#allocation3], 0
    // Predicated region
    $region2: #{tpu_custom_call.1} parent=1 // pred_check
      _
    $region3: #{tpu_custom_call.1} parent=1 // pred_check_branch
      %10 = sbr.rel (0) target = $region5
    $region4: #{tpu_custom_call.1} parent=1 // pred_region
      _
    $region5: #{tpu_custom_call.1} parent=1 // pred_fallthru
      _
    // Predicated region
    $region6: #{tpu_custom_call.1} parent=1 // pred_check
      _
    $region7: #{tpu_custom_call.1} parent=1 // pred_check_branch
      %12 = sbr.rel (0) target = $region9
    $region8: #{tpu_custom_call.1} parent=1 // pred_region
      _
    $region9: #{tpu_custom_call.1} parent=1 // pred_fallthru
      _
    // Predicated region
    $region10: #{tpu_custom_call.1} parent=1 // pred_check
      _
    $region11: #{tpu_custom_call.1} parent=1 // pred_check_branch
      %14 = sbr.rel (0) target = $region13
    $region12: #{tpu_custom_call.1} parent=1 // pred_region
      _
    $region13: #{tpu_custom_call.1} parent=1 // pred_fallthru
      _
    %v15 = vld [vmem:[%s0] sm:$0x3]
    %v16 = vld [vmem:[%s1] sm:$0xff]
    %v17 = vld [vmem:[%s1 + $0x8] sm:$0xff]
    %v18 = vld [vmem:[%s1 + $0x10] sm:$0xff]
    %v19 = vld [vmem:[%s1 + $0x18] sm:$0xff]
    %v20 = vld [vmem:[%s2] sm:$0x1]
    %v22 = vperm.slane %v20, 0
    %vm24 = vcmask 261120
    %v26 = vsel %vm24, %v15, 0
    %28 = vmatpush.msra.mxu0 0.0
    %29 = vmatpush.msra.mxu0 0.0
    %30 = vmatpush.msra.mxu0 0.0
    %31 = vmatpush.msra.mxu0 0.0
    %32 = vmatpush.msra.mxu0 0.0
    %33 = vmatpush.msra.mxu0 0.0
    %34 = vmatpush.msra.mxu0 0.0
    %35 = vmatpush.msra.mxu0 0.0
    %36 = vmatpush.msra.mxu0 0.0
    %37 = vmatpush.msra.mxu0 0.0
    %38 = vmatpush.msra.mxu0 0.0
    %39 = vmatpush.msra.mxu0 0.0
    %40 = vmatpush.msra.mxu0 %v19
    %41 = vmatpush.msra.mxu0 %v18
    %42 = vmatpush.msra.mxu0 %v17
    %43 = vmatpush.msra.mxu0 %v16
    %44 = vmatmul.f32.gmra.mxu0 %v26
    %v45 = vpop.f32.mrf.mxu0
    %v46 = vadd.f32 %v22, %v45
    %47 = vdwg.mxu0
    %v48 = vtanh.pop %v46
    %vm49 = vcmask 58368
    %50 = vst.msk [vmem:[#allocation2] sm:$0x3] %vm49, %v48
    // Predicated region
    $region14: #{tpu_custom_call.1} parent=1 // pred_check
      _
    $region15: #{tpu_custom_call.1} parent=1 // pred_check_branch
      %52 = sbr.rel (0) target = $region17
    $region16: #{tpu_custom_call.1} parent=1 // pred_region
      %54 = vsyncadd [#allocation3], 0
      %s56 = sshll.u32 [#allocation2], 4
      %s57 = int_to_ptr.vmem [resolvable:$true] %s56
      %s58 = sshll.u32 %s3, 4
      %s59 = int_to_ptr.hbm [resolvable:$true] %s58
      %61 = dma.vmem_to_hbm [thread:$0]  %s57, 32, %s59, [#allocation3]
    $region17: #{tpu_custom_call.1} parent=1 // pred_fallthru
      _
    // Predicated region
    $region18: #{tpu_custom_call.1} parent=1 // pred_check
      _
    $region19: #{tpu_custom_call.1} parent=1 // pred_check_branch
      %63 = sbr.rel (0) target = $region21
    $region20: #{tpu_custom_call.1} parent=1 // pred_region
      %65 = dma.done [#allocation3], 32
    $region21: #{tpu_custom_call.1} parent=1 // pred_fallthru
      _
    %66 = vsyncpa [#allocation3], 1

</llo_original>
